<compile_context>
chip_gen: v5e
topology: v5e:2x2
jax: 0.10.0
libtpu: 0.0.40
codegen_flags: <defaults>
</compile_context>

<pallas_src>
import functools

import jax
import jax.numpy as jnp
from jax.experimental import pallas as pl
from jax.experimental.pallas import tpu as pltpu


_NEG_SLOPE = 0.01  # PyTorch nn.LeakyReLU default


def _leaky_relu(x):
    return jnp.where(x > 0, x, _NEG_SLOPE * x)


def _vmem_ceiling():
    """Per-generation VMEM budget: ~3/4 of physical, never above 96 MiB.

    -> ~48 MiB on v7x (64 MiB/TC), ~96 MiB on v5e/v6e (128 MiB).
    """
    try:
        cap = int(pltpu.get_tpu_info().vmem_capacity_bytes)
    except Exception:  # pragma: no cover - conservative fallback
        cap = 64 << 20
    return min((cap * 3) // 4, 96 << 20)


def _coupling_fwd_kernel(
    xc_ref,      # (F+C, TB)  dot dtype : [x rows ; condition rows], batch on lanes
    mask_ref,    # (F+C, 1)   f32       : [mask ; ones(C)] column
    w1_ref,      # (H, F+C)   dot dtype : W1^T
    b1_ref,      # (H, 1)     f32
    w2_ref,      # (H, H)     dot dtype : W2^T
    b2_ref,      # (H, 1)     f32
    w3_ref,      # (2F, H)    dot dtype : W3^T
    b3_ref,      # (2F, 1)    f32
    y_ref,       # (F, TB)    out dtype
    ldj_ref,     # (1, TB)    out dtype  (lane-dense log-det slab)
    *, dim_feature,
):
    F = dim_feature
    dot_dtype = xc_ref.dtype

    xc = xc_ref[...]                                  # (F+C, TB)
    m_fc = mask_ref[...]                              # (F+C, 1) f32

    # Masked network input [mask*x ; condition]: the mask column is 1.0 on the
    # condition rows, so one dot replaces torch.cat([x_a, c]) @ W1.
    # (mask is 0/1 -> the multiply is exact in any dtype.)
    xm = m_fc.astype(dot_dtype) * xc                  # (F+C, TB)

    # Layer 1 + LeakyReLU            (f32 accumulation on the MXU)
    h1 = jnp.dot(w1_ref[...], xm, preferred_element_type=jnp.float32) + b1_ref[...]
    h1 = _leaky_relu(h1).astype(dot_dtype)            # (H, TB)

    # Layer 2 + LeakyReLU
    h2 = jnp.dot(w2_ref[...], h1, preferred_element_type=jnp.float32) + b2_ref[...]
    h2 = _leaky_relu(h2).astype(dot_dtype)            # (H, TB)

    # Layer 3: single (2F, H) operand; split the small result tile in-register.
    t = jnp.dot(w3_ref[...], h2, preferred_element_type=jnp.float32) + b3_ref[...]
    scale = jnp.tanh(t[:F, :])                        # (F, TB) f32
    translate = t[F:, :]                              # (F, TB) f32

    m = m_fc[:F, :]                                   # (F, 1)
    one_minus_m = 1.0 - m
    x = xc[:F, :].astype(jnp.float32)                 # unmasked x rows
    x_a = m * x

    y = x_a + one_minus_m * (x * jnp.exp(scale) + translate)
    # sublane reduce over F (XLU slot) -> lane-dense (1, TB) slab.
    ldj = jnp.sum(scale * one_minus_m, axis=0, keepdims=True)

    y_ref[...] = y.astype(y_ref.dtype)
    ldj_ref[...] = ldj.astype(ldj_ref.dtype)


def conditional_coupling_forward(x, condition, mask, params, *,
                                 block_b=2048, dot_dtype=None):
    """Forward of ConditionalCouplingLayer. Returns (y, log_det_J).

    dot_dtype: storage/MXU dtype for activations & weights (default: x.dtype).
               Pass jnp.bfloat16 on v6e/v7x to halve HBM/VMEM traffic; all
               element-wise math stays f32.
    """
    B, F = x.shape
    C = condition.shape[-1]
    H = params["w2"].shape[0]
    out_dtype = x.dtype
    if dot_dtype is None:
        dot_dtype = x.dtype

    # ---- transposed, lane-dense layout (batch on lanes) ---------------------
    xc_t = jnp.concatenate([x, condition], axis=-1).T.astype(dot_dtype)   # (F+C, B)
    mask_fc = jnp.concatenate(
        [mask.reshape(-1).astype(jnp.float32), jnp.ones((C,), jnp.float32)]
    ).reshape(F + C, 1)

    w1_t = params["w1"].T.astype(dot_dtype)            # (H, F+C)
    w2_t = params["w2"].T.astype(dot_dtype)            # (H, H)
    w3_t = params["w3"].T.astype(dot_dtype)            # (2F, H)
    b1c = params["b1"].reshape(H, 1).astype(jnp.float32)
    b2c = params["b2"].reshape(H, 1).astype(jnp.float32)
    b3c = params["b3"].reshape(2 * F, 1).astype(jnp.float32)

    # ---- batch (lane) tiling: multiples of 128 lanes, never a single giant
    # fallback block; split so v7x's second TensorCore has >=2 grid steps. -----
    tb = min(block_b, B)
    tb = (tb // 128) * 128
    if tb == 0:
        tb = B                                   # full-extent block (B < 128)
    elif pl.cdiv(B, tb) < 2 and tb >= 256:
        tb = ((tb // 2) // 128) * 128            # guarantee >= 2 grid iterations
    grid = (pl.cdiv(B, tb),)

    def act_spec(rows):
        return pl.BlockSpec((rows, tb), lambda i: (0, i))

    def const_spec(shape):
        return pl.BlockSpec(shape, lambda i: (0, 0))

    in_specs = [
        act_spec(F + C),            # xc (streamed over batch)
        const_spec((F + C, 1)),     # mask column
        const_spec((H, F + C)),     # W1^T
        const_spec((H, 1)),         # b1
        const_spec((H, H)),         # W2^T
        const_spec((H, 1)),         # b2
        const_spec((2 * F, H)),     # W3^T
        const_spec((2 * F, 1)),     # b3
    ]
    out_specs = (act_spec(F), act_spec(1))

    # ---- VMEM budget (accurate: 2x only for streamed tiles and the two
    # buffers of the VMEM-resident constants) ---------------------------------
    in_item = jnp.dtype(dot_dtype).itemsize
    out_item = jnp.dtype(out_dtype).itemsize
    const_bytes = (in_item * (H * (F + C) + H * H + 2 * F * H)
                   + 4 * (2 * H + 2 * F + (F + C)))
    stream_bytes = tb * ((F + C) * in_item + F * out_item + out_item)
    live_f32 = 4 * tb * (2 * H + 4 * F + (F + C))      # h1/h2 + small f32 temporaries
    vmem_needed = 2 * stream_bytes + 2 * const_bytes + live_f32 + (2 << 20)
    vmem_limit = int(min(max(vmem_needed, 16 << 20), _vmem_ceiling()))

    cost = pl.CostEstimate(
        flops=2 * B * ((F + C) * H + H * H + 2 * F * H),
        transcendentals=2 * B * F,                     # tanh + exp per feature
        bytes_accessed=int(const_bytes
                           + B * ((F + C) * in_item + (F + 1) * out_item)),
    )

    kernel = functools.partial(_coupling_fwd_kernel, dim_feature=F)
    y_t, ldj_t = pl.pallas_call(
        kernel,
        out_shape=(
            jax.ShapeDtypeStruct((F, B), out_dtype),
            jax.ShapeDtypeStruct((1, B), out_dtype),
        ),
        grid=grid,
        in_specs=in_specs,
        out_specs=out_specs,
        compiler_params=pltpu.CompilerParams(
            dimension_semantics=("parallel",),
            vmem_limit_bytes=vmem_limit,
        ),
        cost_estimate=cost,
    )(xc_t, mask_fc, w1_t, b1c, w2_t, b2c, w3_t, b3c)

    # Wrapper-side layout plumbing back to the module's (B, F) / (B, 1) shapes.
    return y_t.T, ldj_t.T


def init_params(key, dim_feature, dim_condition, dim_hidden):
    """Deterministic init mimicking PyTorch's default Linear init (+-1/sqrt(fan_in))."""
    ks = jax.random.split(key, 6)
    d_in1 = dim_feature + dim_condition

    def uni(k, shape, fan_in):
        bound = 1.0 / jnp.sqrt(fan_in)
        return jax.random.uniform(k, shape, jnp.float32, -bound, bound)

    return {
        "w1": uni(ks[0], (d_in1, dim_hidden), d_in1),
        "b1": uni(ks[1], (dim_hidden,), d_in1),
        "w2": uni(ks[2], (dim_hidden, dim_hidden), dim_hidden),
        "b2": uni(ks[3], (dim_hidden,), dim_hidden),
        "w3": uni(ks[4], (dim_hidden, 2 * dim_feature), dim_hidden),
        "b3": uni(ks[5], (2 * dim_feature,), dim_hidden),
    }


def reference_forward(x, condition, mask, params):
    """Pure-JAX reference mirroring the PyTorch module."""
    F = x.shape[-1]
    m = mask.reshape(1, F)
    x_a = m * x
    h = jnp.concatenate([x_a, condition], axis=-1)
    h = _leaky_relu(h @ params["w1"] + params["b1"])
    h = _leaky_relu(h @ params["w2"] + params["b2"])
    t = h @ params["w3"] + params["b3"]
    scale = jnp.tanh(t[:, :F])
    translate = t[:, F:]
    y = x_a + (1.0 - m) * (x * jnp.exp(scale) + translate)
    ldj = jnp.sum(scale * (1.0 - m), axis=-1, keepdims=True)
    return y, ldj


if __name__ == "__main__":
    B, DIM_FEATURE, DIM_CONDITION, DIM_HIDDEN = 256, 4, 4, 32

    key = jax.random.PRNGKey(0)
    kx, kc, kp = jax.random.split(key, 3)

    x = jax.random.normal(kx, (B, DIM_FEATURE), jnp.float32)
    condition = jax.random.normal(kc, (B, DIM_CONDITION), jnp.float32)
    # Standard alternating coupling mask (0, 1, 0, 1, ...).
    mask = (jnp.arange(DIM_FEATURE) % 2).astype(jnp.float32)

    params = init_params(kp, DIM_FEATURE, DIM_CONDITION, DIM_HIDDEN)
    y_ref, ldj_ref = reference_forward(x, condition, mask, params)

    # Exact-semantics path (f32 storage + f32 MXU). Default tiling gives a
    # 2-step, 128-lane-per-step grid for B=256.
    y, ldj = conditional_coupling_forward(x, condition, mask, params)
    jax.block_until_ready((y, ldj))
    assert y.shape == (B, DIM_FEATURE) and ldj.shape == (B, 1)
    assert jnp.allclose(y, y_ref, atol=1e-5, rtol=1e-5), "y mismatch (f32)"
    assert jnp.allclose(ldj, ldj_ref, atol=1e-5, rtol=1e-5), "log_det_J mismatch (f32)"

    # bf16 storage fast path (v6e/v7x): bf16 feeds only the MXU, f32 everywhere else.
    y16, ldj16 = conditional_coupling_forward(
        x, condition, mask, params, dot_dtype=jnp.bfloat16)
    jax.block_until_ready((y16, ldj16))
    assert jnp.allclose(y16, y_ref, atol=5e-2, rtol=5e-2), "y mismatch (bf16)"
    assert jnp.allclose(ldj16, ldj_ref, atol=5e-2, rtol=5e-2), "log_det_J mismatch (bf16)"

    print("KERNEL_OK")
</pallas_src>

<mosaic_0001>
module attributes {stable_mosaic.version = 11 : i64} {
  func.func @_coupling_fwd_kernel(%arg0: i32, %arg1: memref<8x128xf32, #tpu.memory_space<vmem>>, %arg2: memref<8x1xf32, #tpu.memory_space<vmem>>, %arg3: memref<32x8xf32, #tpu.memory_space<vmem>>, %arg4: memref<32x1xf32, #tpu.memory_space<vmem>>, %arg5: memref<32x32xf32, #tpu.memory_space<vmem>>, %arg6: memref<32x1xf32, #tpu.memory_space<vmem>>, %arg7: memref<8x32xf32, #tpu.memory_space<vmem>>, %arg8: memref<8x1xf32, #tpu.memory_space<vmem>>, %arg9: memref<4x128xf32, #tpu.memory_space<vmem>>, %arg10: memref<1x128xf32, #tpu.memory_space<vmem>>) attributes {dimension_semantics = [#tpu.dimension_semantics<parallel>], iteration_bounds = array<i64: 2>, scalar_prefetch = 0 : i64, scratch_operands = 0 : i64, tpu.core_type = #tpu.core_type<tc>, window_params = [{transform_indices = @transform_0, window_bounds = array<i64: 8, 128>}, {pipeline_mode = #tpu.pipeline_mode<synchronous>, transform_indices = @transform_1, window_bounds = array<i64: 8, 1>}, {pipeline_mode = #tpu.pipeline_mode<synchronous>, transform_indices = @transform_2, window_bounds = array<i64: 32, 8>}, {pipeline_mode = #tpu.pipeline_mode<synchronous>, transform_indices = @transform_3, window_bounds = array<i64: 32, 1>}, {pipeline_mode = #tpu.pipeline_mode<synchronous>, transform_indices = @transform_4, window_bounds = array<i64: 32, 32>}, {pipeline_mode = #tpu.pipeline_mode<synchronous>, transform_indices = @transform_5, window_bounds = array<i64: 32, 1>}, {pipeline_mode = #tpu.pipeline_mode<synchronous>, transform_indices = @transform_6, window_bounds = array<i64: 8, 32>}, {pipeline_mode = #tpu.pipeline_mode<synchronous>, transform_indices = @transform_7, window_bounds = array<i64: 8, 1>}, {transform_indices = @transform_8, window_bounds = array<i64: 4, 128>}, {transform_indices = @transform_9, window_bounds = array<i64: 1, 128>}]} {
    %c0 = arith.constant 0 : index
    %c0_0 = arith.constant 0 : index
    %0 = vector.load %arg1[%c0, %c0_0] : memref<8x128xf32, #tpu.memory_space<vmem>>, vector<8x128xf32>
    %c0_1 = arith.constant 0 : index
    %c0_2 = arith.constant 0 : index
    %1 = vector.load %arg2[%c0_1, %c0_2] : memref<8x1xf32, #tpu.memory_space<vmem>>, vector<8x1xf32>
    %2 = vector.broadcast %1 : vector<8x1xf32> to vector<8x128xf32>
    %3 = arith.mulf %2, %0 : vector<8x128xf32>
    %c0_3 = arith.constant 0 : index
    %c0_4 = arith.constant 0 : index
    %4 = vector.load %arg3[%c0_3, %c0_4] : memref<32x8xf32, #tpu.memory_space<vmem>>, vector<32x8xf32>
    %cst = arith.constant dense<0.000000e+00> : vector<32x128xf32>
    %5 = tpu.matmul %4, %3, %cst {dimension_numbers = #tpu.dot_dimension_numbers<[1], [0], [0], [1], [0, 0, 1, 1], [], []>} : vector<32x8xf32>, vector<8x128xf32>, vector<32x128xf32> -> vector<32x128xf32>
    %c0_5 = arith.constant 0 : index
    %c0_6 = arith.constant 0 : index
    %6 = vector.load %arg4[%c0_5, %c0_6] : memref<32x1xf32, #tpu.memory_space<vmem>>, vector<32x1xf32>
    %7 = vector.broadcast %6 : vector<32x1xf32> to vector<32x128xf32>
    %8 = arith.addf %5, %7 : vector<32x128xf32>
    %cst_7 = arith.constant 0.000000e+00 : f32
    %9 = vector.broadcast %cst_7 : f32 to vector<32x128xf32>
    %10 = arith.cmpf ogt, %8, %9 : vector<32x128xf32>
    %cst_8 = arith.constant 0.00999999977 : f32
    %11 = vector.broadcast %cst_8 : f32 to vector<32x128xf32>
    %12 = arith.mulf %11, %8 : vector<32x128xf32>
    %13 = arith.select %10, %8, %12 : vector<32x128xi1>, vector<32x128xf32>
    %c0_9 = arith.constant 0 : index
    %c0_10 = arith.constant 0 : index
    %14 = vector.load %arg5[%c0_9, %c0_10] : memref<32x32xf32, #tpu.memory_space<vmem>>, vector<32x32xf32>
    %cst_11 = arith.constant dense<0.000000e+00> : vector<32x128xf32>
    %15 = tpu.matmul %14, %13, %cst_11 {dimension_numbers = #tpu.dot_dimension_numbers<[1], [0], [0], [1], [0, 0, 1, 1], [], []>} : vector<32x32xf32>, vector<32x128xf32>, vector<32x128xf32> -> vector<32x128xf32>
    %c0_12 = arith.constant 0 : index
    %c0_13 = arith.constant 0 : index
    %16 = vector.load %arg6[%c0_12, %c0_13] : memref<32x1xf32, #tpu.memory_space<vmem>>, vector<32x1xf32>
    %17 = vector.broadcast %16 : vector<32x1xf32> to vector<32x128xf32>
    %18 = arith.addf %15, %17 : vector<32x128xf32>
    %cst_14 = arith.constant 0.000000e+00 : f32
    %19 = vector.broadcast %cst_14 : f32 to vector<32x128xf32>
    %20 = arith.cmpf ogt, %18, %19 : vector<32x128xf32>
    %cst_15 = arith.constant 0.00999999977 : f32
    %21 = vector.broadcast %cst_15 : f32 to vector<32x128xf32>
    %22 = arith.mulf %21, %18 : vector<32x128xf32>
    %23 = arith.select %20, %18, %22 : vector<32x128xi1>, vector<32x128xf32>
    %c0_16 = arith.constant 0 : index
    %c0_17 = arith.constant 0 : index
    %24 = vector.load %arg7[%c0_16, %c0_17] : memref<8x32xf32, #tpu.memory_space<vmem>>, vector<8x32xf32>
    %cst_18 = arith.constant dense<0.000000e+00> : vector<8x128xf32>
    %25 = tpu.matmul %24, %23, %cst_18 {dimension_numbers = #tpu.dot_dimension_numbers<[1], [0], [0], [1], [0, 0, 1, 1], [], []>} : vector<8x32xf32>, vector<32x128xf32>, vector<8x128xf32> -> vector<8x128xf32>
    %c0_19 = arith.constant 0 : index
    %c0_20 = arith.constant 0 : index
    %26 = vector.load %arg8[%c0_19, %c0_20] : memref<8x1xf32, #tpu.memory_space<vmem>>, vector<8x1xf32>
    %27 = vector.broadcast %26 : vector<8x1xf32> to vector<8x128xf32>
    %28 = arith.addf %25, %27 : vector<8x128xf32>
    %29 = vector.extract_strided_slice %28 {offsets = [0, 0], sizes = [4, 128], strides = [1, 1]} : vector<8x128xf32> to vector<4x128xf32>
    %30 = math.tanh %29 : vector<4x128xf32>
    %31 = vector.extract_strided_slice %28 {offsets = [4, 0], sizes = [4, 128], strides = [1, 1]} : vector<8x128xf32> to vector<4x128xf32>
    %32 = vector.extract_strided_slice %1 {offsets = [0, 0], sizes = [4, 1], strides = [1, 1]} : vector<8x1xf32> to vector<4x1xf32>
    %cst_21 = arith.constant 1.000000e+00 : f32
    %33 = vector.broadcast %cst_21 : f32 to vector<4x1xf32>
    %34 = arith.subf %33, %32 : vector<4x1xf32>
    %35 = vector.extract_strided_slice %0 {offsets = [0, 0], sizes = [4, 128], strides = [1, 1]} : vector<8x128xf32> to vector<4x128xf32>
    %36 = vector.broadcast %32 : vector<4x1xf32> to vector<4x128xf32>
    %37 = arith.mulf %36, %35 : vector<4x128xf32>
    %38 = math.exp %30 : vector<4x128xf32>
    %39 = arith.mulf %35, %38 : vector<4x128xf32>
    %40 = arith.addf %39, %31 : vector<4x128xf32>
    %41 = vector.broadcast %34 : vector<4x1xf32> to vector<4x128xf32>
    %42 = arith.mulf %41, %40 : vector<4x128xf32>
    %43 = arith.addf %37, %42 : vector<4x128xf32>
    %44 = vector.broadcast %34 : vector<4x1xf32> to vector<4x128xf32>
    %45 = arith.mulf %30, %44 : vector<4x128xf32>
    %cst_22 = arith.constant dense<0.000000e+00> : vector<128xf32>
    %46 = vector.multi_reduction <add>, %45, %cst_22 [0] : vector<4x128xf32> to vector<128xf32>
    %47 = vector.shape_cast %46 : vector<128xf32> to vector<1x128xf32>
    %c0_23 = arith.constant 0 : index
    %c0_24 = arith.constant 0 : index
    %48 = vector.load %arg9[%c0_23, %c0_24] : memref<4x128xf32, #tpu.memory_space<vmem>>, vector<4x128xf32>
    tpu.vector_store %arg9[%c0_23, %c0_24], %43 {strides = array<i32>} : memref<4x128xf32, #tpu.memory_space<vmem>>, vector<4x128xf32>,
    %c0_25 = arith.constant 0 : index
    %c0_26 = arith.constant 0 : index
    %49 = vector.load %arg10[%c0_25, %c0_26] : memref<1x128xf32, #tpu.memory_space<vmem>>, vector<1x128xf32>
    tpu.vector_store %arg10[%c0_25, %c0_26], %47 {strides = array<i32>} : memref<1x128xf32, #tpu.memory_space<vmem>>, vector<1x128xf32>,
    return
  }
  func.func @transform_0(%arg0: i32) -> (i32, i32) {
    %c0_i32 = arith.constant 0 : i32
    %c0_i32_0 = arith.constant 0 : i32
    return %c0_i32, %arg0 : i32, i32
  }
  func.func @transform_1(%arg0: i32) -> (i32, i32) {
    %c0_i32 = arith.constant 0 : i32
    %c0_i32_0 = arith.constant 0 : i32
    %c0_i32_1 = arith.constant 0 : i32
    return %c0_i32, %c0_i32_0 : i32, i32
  }
  func.func @transform_2(%arg0: i32) -> (i32, i32) {
    %c0_i32 = arith.constant 0 : i32
    %c0_i32_0 = arith.constant 0 : i32
    %c0_i32_1 = arith.constant 0 : i32
    return %c0_i32, %c0_i32_0 : i32, i32
  }
  func.func @transform_3(%arg0: i32) -> (i32, i32) {
    %c0_i32 = arith.constant 0 : i32
    %c0_i32_0 = arith.constant 0 : i32
    %c0_i32_1 = arith.constant 0 : i32
    return %c0_i32, %c0_i32_0 : i32, i32
  }
  func.func @transform_4(%arg0: i32) -> (i32, i32) {
    %c0_i32 = arith.constant 0 : i32
    %c0_i32_0 = arith.constant 0 : i32
    %c0_i32_1 = arith.constant 0 : i32
    return %c0_i32, %c0_i32_0 : i32, i32
  }
  func.func @transform_5(%arg0: i32) -> (i32, i32) {
    %c0_i32 = arith.constant 0 : i32
    %c0_i32_0 = arith.constant 0 : i32
    %c0_i32_1 = arith.constant 0 : i32
    return %c0_i32, %c0_i32_0 : i32, i32
  }
  func.func @transform_6(%arg0: i32) -> (i32, i32) {
    %c0_i32 = arith.constant 0 : i32
    %c0_i32_0 = arith.constant 0 : i32
    %c0_i32_1 = arith.constant 0 : i32
    return %c0_i32, %c0_i32_0 : i32, i32
  }
  func.func @transform_7(%arg0: i32) -> (i32, i32) {
    %c0_i32 = arith.constant 0 : i32
    %c0_i32_0 = arith.constant 0 : i32
    %c0_i32_1 = arith.constant 0 : i32
    return %c0_i32, %c0_i32_0 : i32, i32
  }
  func.func @transform_8(%arg0: i32) -> (i32, i32) {
    %c0_i32 = arith.constant 0 : i32
    %c0_i32_0 = arith.constant 0 : i32
    return %c0_i32, %arg0 : i32, i32
  }
  func.func @transform_9(%arg0: i32) -> (i32, i32) {
    %c0_i32 = arith.constant 0 : i32
    %c0_i32_0 = arith.constant 0 : i32
    return %c0_i32, %arg0 : i32, i32
  }
}

</mosaic_0001>

<llo_original>
// kernel: tpu_custom_call.1
$region0: #{tpu_custom_call.1}
  #allocation0 [shape = 'u32[]', space=smem, size = 0x4, offset = 0x4, fixed_abs, tag = 'smem constant byte address 0x4 - core index']
  #allocation1 [shape = 'u32[72,128]{1,0:T(1,128)}', space=vmem, size = 0x9000, scoped, tag = 'internal scratch']
  %s0 = inlined_call_operand.vmem [shape: f32[8,256], index: 0, kind: input, shape index: {}]
  %s1 = inlined_call_operand.vmem [shape: f32[8,1], index: 1, kind: input, shape index: {}]
  %s2 = inlined_call_operand.vmem [shape: f32[32,8], index: 2, kind: input, shape index: {}]
  %s3 = inlined_call_operand.vmem [shape: f32[32,1], index: 3, kind: input, shape index: {}]
  %s4 = inlined_call_operand.vmem [shape: f32[32,32], index: 4, kind: input, shape index: {}]
  %s5 = inlined_call_operand.vmem [shape: f32[32,1], index: 5, kind: input, shape index: {}]
  %s6 = inlined_call_operand.vmem [shape: f32[8,32], index: 6, kind: input, shape index: {}]
  %s7 = inlined_call_operand.vmem [shape: f32[8,1], index: 7, kind: input, shape index: {}]
  %s8 = inlined_call_operand.hbm [shape: f32[4,256], index: 8, kind: output, shape index: {0}]
  %s9 = inlined_call_operand.hbm [shape: f32[1,256], index: 9, kind: output, shape index: {1}]
  %10 = xla_tuple %s8, %s9
  %s11 = sld [smem:[#allocation0]]
  $region73: #{tpu_custom_call.1} parent=0
    _
  %s13 = ssub.s32 1, %s11
  %s14 = scalar_select 0, %s13, %s11
  $region1: #{tpu_custom_call.1} parent=0
    #allocation2 [shape = 'u8[4096]{0}', space=vmem, size = 0x1000, scoped, tag = 'output window, operand 0']
    #allocation3 [shape = 's32[2]{0}', space=sflag, size = 0x8, scoped, tag = 'scoped memory for tpu_custom_call.1']
    #allocation4 [shape = 'u8[1024]{0}', space=vmem, size = 0x400, scoped, tag = 'output window, operand 1']
    #allocation5 [shape = 's32[2]{0}', space=sflag, size = 0x8, scoped, tag = 'scoped memory for tpu_custom_call.1']
    %15 = vsyncpa [#allocation3], 0
    %s16 = scalar_lea.sflag [#allocation3], 1
    %17 = vsyncpa %s16, 0
    %18 = vsyncpa [#allocation5], 0
    %s19 = scalar_lea.sflag [#allocation5], 1
    %20 = vsyncpa %s19, 0
    loop: start=0, step=1, limit=4
    $region2: #{tpu_custom_call.1} parent=1 // loop_pre_header
      _
    $region3: #{tpu_custom_call.1} parent=1 // loop_header
      %s22 = sphi 0, %s26
      %p23 = scmp.ge.s32.totalorder %s22, 4
      %s32 = sphi 0, %s34
      %s35 = sphi 0, %s32
      %s36 = sphi 0, %s35
      %s52 = sphi 0, %s36
      %s56 = sphi 0, %s56
      %s58 = sphi 0, %s56
      %s59 = sphi 0, %s58
      %s73 = sphi 0, %s59
      %s77 = sphi 0, %s77
      %s79 = sphi 0, %s77
      %s80 = sphi 0, %s79
      %s94 = sphi 0, %s80
      %s98 = sphi 0, %s98
      %s100 = sphi 0, %s98
      %s101 = sphi 0, %s100
      %s115 = sphi 0, %s101
      %s119 = sphi 0, %s119
      %s121 = sphi 0, %s119
      %s122 = sphi 0, %s121
      %s136 = sphi 0, %s122
      %s140 = sphi 0, %s140
      %s142 = sphi 0, %s140
      %s143 = sphi 0, %s142
      %s157 = sphi 0, %s143
      %s161 = sphi 0, %s161
      %s163 = sphi 0, %s161
      %s164 = sphi 0, %s163
      %s178 = sphi 0, %s164
      %s182 = sphi 0, %s182
      %s184 = sphi 0, %s182
      %s185 = sphi 0, %s184
      %s199 = sphi 0, %s185
      %s205 = sphi 0, %s207
      %s208 = sphi 0, %s205
      %s209 = sphi 0, %s208
      %s225 = sphi 0, %s209
      %s231 = sphi 0, %s233
      %s234 = sphi 0, %s231
      %s235 = sphi 0, %s234
      %s251 = sphi 0, %s235
    $region4: #{tpu_custom_call.1} parent=1 // loop_header_branch
      %25 = sbr.rel (%p23) target = $region8
    $region5: #{tpu_custom_call.1} parent=1 // loop_body
      %s27 = ssub.s32 %s22, 1
      %s28 = ssub.s32 %s22, 2
      %s29 = sadd.s32 %s22, 1
      %s30 = ssub.s32 %s22, %s29
      %p31 = scmp.eq.s32.totalorder %s30, 0
      %s33 = sadd.s32 %s32, 1
      %s34 = scalar_select %p31, %s32, %s33
      %p37 = pneg %p31
      %p38 = scmp.eq.s32.totalorder %s22, 1
      %p39 = por %p37, %p38
      %p40 = scmp.ne.s32.totalorder %s32, %s35
      %p41 = scmp.eq.s32.totalorder %s22, 0
      %p42 = por %p40, %p41
      %p43 = scmp.ne.s32.totalorder %s32, %s35
      %p44 = scmp.eq.s32.totalorder %s27, 1
      %p45 = por %p43, %p44
      %p46 = scmp.ne.s32.totalorder %s35, %s36
      %p47 = scmp.eq.s32.totalorder %s27, 0
      %p48 = por %p46, %p47
      %p49 = scmp.ne.s32.totalorder %s35, %s36
      %p50 = scmp.eq.s32.totalorder %s28, 1
      %p51 = por %p49, %p50
      %p53 = scmp.ne.s32.totalorder %s36, %s52
      %p54 = scmp.eq.s32.totalorder %s28, 0
      %p55 = por %p53, %p54
      %s57 = sadd.s32 %s56, 1
      %p60 = scmp.eq.s32.totalorder %s22, 1
      %p61 = scmp.ne.s32.totalorder %s56, %s58
      %p62 = scmp.eq.s32.totalorder %s22, 0
      %p63 = por %p61, %p62
      %p64 = scmp.ne.s32.totalorder %s56, %s58
      %p65 = scmp.eq.s32.totalorder %s27, 1
      %p66 = por %p64, %p65
      %p67 = scmp.ne.s32.totalorder %s58, %s59
      %p68 = scmp.eq.s32.totalorder %s27, 0
      %p69 = por %p67, %p68
      %p70 = scmp.ne.s32.totalorder %s58, %s59
      %p71 = scmp.eq.s32.totalorder %s28, 1
      %p72 = por %p70, %p71
      %p74 = scmp.ne.s32.totalorder %s59, %s73
      %p75 = scmp.eq.s32.totalorder %s28, 0
      %p76 = por %p74, %p75
      %s78 = sadd.s32 %s77, 1
      %p81 = scmp.eq.s32.totalorder %s22, 1
      %p82 = scmp.ne.s32.totalorder %s77, %s79
      %p83 = scmp.eq.s32.totalorder %s22, 0
      %p84 = por %p82, %p83
      %p85 = scmp.ne.s32.totalorder %s77, %s79
      %p86 = scmp.eq.s32.totalorder %s27, 1
      %p87 = por %p85, %p86
      %p88 = scmp.ne.s32.totalorder %s79, %s80
      %p89 = scmp.eq.s32.totalorder %s27, 0
      %p90 = por %p88, %p89
      %p91 = scmp.ne.s32.totalorder %s79, %s80
      %p92 = scmp.eq.s32.totalorder %s28, 1
      %p93 = por %p91, %p92
      %p95 = scmp.ne.s32.totalorder %s80, %s94
      %p96 = scmp.eq.s32.totalorder %s28, 0
      %p97 = por %p95, %p96
      %s99 = sadd.s32 %s98, 1
      %p102 = scmp.eq.s32.totalorder %s22, 1
      %p103 = scmp.ne.s32.totalorder %s98, %s100
      %p104 = scmp.eq.s32.totalorder %s22, 0
      %p105 = por %p103, %p104
      %p106 = scmp.ne.s32.totalorder %s98, %s100
      %p107 = scmp.eq.s32.totalorder %s27, 1
      %p108 = por %p106, %p107
      %p109 = scmp.ne.s32.totalorder %s100, %s101
      %p110 = scmp.eq.s32.totalorder %s27, 0
      %p111 = por %p109, %p110
      %p112 = scmp.ne.s32.totalorder %s100, %s101
      %p113 = scmp.eq.s32.totalorder %s28, 1
      %p114 = por %p112, %p113
      %p116 = scmp.ne.s32.totalorder %s101, %s115
      %p117 = scmp.eq.s32.totalorder %s28, 0
      %p118 = por %p116, %p117
      %s120 = sadd.s32 %s119, 1
      %p123 = scmp.eq.s32.totalorder %s22, 1
      %p124 = scmp.ne.s32.totalorder %s119, %s121
      %p125 = scmp.eq.s32.totalorder %s22, 0
      %p126 = por %p124, %p125
      %p127 = scmp.ne.s32.totalorder %s119, %s121
      %p128 = scmp.eq.s32.totalorder %s27, 1
      %p129 = por %p127, %p128
      %p130 = scmp.ne.s32.totalorder %s121, %s122
      %p131 = scmp.eq.s32.totalorder %s27, 0
      %p132 = por %p130, %p131
      %p133 = scmp.ne.s32.totalorder %s121, %s122
      %p134 = scmp.eq.s32.totalorder %s28, 1
      %p135 = por %p133, %p134
      %p137 = scmp.ne.s32.totalorder %s122, %s136
      %p138 = scmp.eq.s32.totalorder %s28, 0
      %p139 = por %p137, %p138
      %s141 = sadd.s32 %s140, 1
      %p144 = scmp.eq.s32.totalorder %s22, 1
      %p145 = scmp.ne.s32.totalorder %s140, %s142
      %p146 = scmp.eq.s32.totalorder %s22, 0
      %p147 = por %p145, %p146
      %p148 = scmp.ne.s32.totalorder %s140, %s142
      %p149 = scmp.eq.s32.totalorder %s27, 1
      %p150 = por %p148, %p149
      %p151 = scmp.ne.s32.totalorder %s142, %s143
      %p152 = scmp.eq.s32.totalorder %s27, 0
      %p153 = por %p151, %p152
      %p154 = scmp.ne.s32.totalorder %s142, %s143
      %p155 = scmp.eq.s32.totalorder %s28, 1
      %p156 = por %p154, %p155
      %p158 = scmp.ne.s32.totalorder %s143, %s157
      %p159 = scmp.eq.s32.totalorder %s28, 0
      %p160 = por %p158, %p159
      %s162 = sadd.s32 %s161, 1
      %p165 = scmp.eq.s32.totalorder %s22, 1
      %p166 = scmp.ne.s32.totalorder %s161, %s163
      %p167 = scmp.eq.s32.totalorder %s22, 0
      %p168 = por %p166, %p167
      %p169 = scmp.ne.s32.totalorder %s161, %s163
      %p170 = scmp.eq.s32.totalorder %s27, 1
      %p171 = por %p169, %p170
      %p172 = scmp.ne.s32.totalorder %s163, %s164
      %p173 = scmp.eq.s32.totalorder %s27, 0
      %p174 = por %p172, %p173
      %p175 = scmp.ne.s32.totalorder %s163, %s164
      %p176 = scmp.eq.s32.totalorder %s28, 1
      %p177 = por %p175, %p176
      %p179 = scmp.ne.s32.totalorder %s164, %s178
      %p180 = scmp.eq.s32.totalorder %s28, 0
      %p181 = por %p179, %p180
      %s183 = sadd.s32 %s182, 1
      %p186 = scmp.eq.s32.totalorder %s22, 1
      %p187 = scmp.ne.s32.totalorder %s182, %s184
      %p188 = scmp.eq.s32.totalorder %s22, 0
      %p189 = por %p187, %p188
      %p190 = scmp.ne.s32.totalorder %s182, %s184
      %p191 = scmp.eq.s32.totalorder %s27, 1
      %p192 = por %p190, %p191
      %p193 = scmp.ne.s32.totalorder %s184, %s185
      %p194 = scmp.eq.s32.totalorder %s27, 0
      %p195 = por %p193, %p194
      %p196 = scmp.ne.s32.totalorder %s184, %s185
      %p197 = scmp.eq.s32.totalorder %s28, 1
      %p198 = por %p196, %p197
      %p200 = scmp.ne.s32.totalorder %s185, %s199
      %p201 = scmp.eq.s32.totalorder %s28, 0
      %p202 = por %p200, %p201
      %s203 = ssub.s32 %s22, %s29
      %p204 = scmp.eq.s32.totalorder %s203, 0
      %s206 = sadd.s32 %s205, 1
      %s207 = scalar_select %p204, %s205, %s206
      %p210 = pneg %p204
      %p211 = scmp.eq.s32.totalorder %s22, 1
      %p212 = por %p210, %p211
      %p213 = scmp.ne.s32.totalorder %s205, %s208
      %p214 = scmp.eq.s32.totalorder %s22, 0
      %p215 = por %p213, %p214
      %p216 = scmp.ne.s32.totalorder %s205, %s208
      %p217 = scmp.eq.s32.totalorder %s27, 1
      %p218 = por %p216, %p217
      %p219 = scmp.ne.s32.totalorder %s208, %s209
      %p220 = scmp.eq.s32.totalorder %s27, 0
      %p221 = por %p219, %p220
      %p222 = scmp.ne.s32.totalorder %s208, %s209
      %p223 = scmp.eq.s32.totalorder %s28, 1
      %p224 = por %p222, %p223
      %p226 = scmp.ne.s32.totalorder %s209, %s225
      %p227 = scmp.eq.s32.totalorder %s28, 0
      %p228 = por %p226, %p227
      %s229 = ssub.s32 %s22, %s29
      %p230 = scmp.eq.s32.totalorder %s229, 0
      %s232 = sadd.s32 %s231, 1
      %s233 = scalar_select %p230, %s231, %s232
      %p236 = pneg %p230
      %p237 = scmp.eq.s32.totalorder %s22, 1
      %p238 = por %p236, %p237
      %p239 = scmp.ne.s32.totalorder %s231, %s234
      %p240 = scmp.eq.s32.totalorder %s22, 0
      %p241 = por %p239, %p240
      %p242 = scmp.ne.s32.totalorder %s231, %s234
      %p243 = scmp.eq.s32.totalorder %s27, 1
      %p244 = por %p242, %p243
      %p245 = scmp.ne.s32.totalorder %s234, %s235
      %p246 = scmp.eq.s32.totalorder %s27, 0
      %p247 = por %p245, %p246
      %p248 = scmp.ne.s32.totalorder %s234, %s235
      %p249 = scmp.eq.s32.totalorder %s28, 1
      %p250 = por %p248, %p249
      %p252 = scmp.ne.s32.totalorder %s235, %s251
      %p253 = scmp.eq.s32.totalorder %s28, 0
      %p254 = por %p252, %p253
      %p255 = scmp.le.s32.totalorder 1, %s22
      %p256 = scmp.lt.s32.totalorder %s22, 3
      %p257 = pnand %p255, %p256
      %p258 = pneg %p257
      // Predicated region
      $region9: #{tpu_custom_call.1} parent=5 // pred_check
        _
      $region10: #{tpu_custom_call.1} parent=5 // pred_check_branch
        %260 = sbr.rel (%p257) target = $region12
      $region11: #{tpu_custom_call.1} parent=5 // pred_region
        %s261 = ssub.s32 %s22, 1
        // Predicated region
        $region13: #{tpu_custom_call.1} parent=11 // pred_check
          %p262 = pneg %p69
        $region14: #{tpu_custom_call.1} parent=11 // pred_check_branch
          %264 = sbr.rel (%p262) target = $region16
        $region15: #{tpu_custom_call.1} parent=11 // pred_region
          _
        $region16: #{tpu_custom_call.1} parent=11 // pred_fallthru
          _
        // Predicated region
        $region17: #{tpu_custom_call.1} parent=11 // pred_check
          %p265 = pneg %p90
        $region18: #{tpu_custom_call.1} parent=11 // pred_check_branch
          %267 = sbr.rel (%p265) target = $region20
        $region19: #{tpu_custom_call.1} parent=11 // pred_region
          _
        $region20: #{tpu_custom_call.1} parent=11 // pred_fallthru
          _
        // Predicated region
        $region21: #{tpu_custom_call.1} parent=11 // pred_check
          %p268 = pneg %p111
        $region22: #{tpu_custom_call.1} parent=11 // pred_check_branch
          %270 = sbr.rel (%p268) target = $region24
        $region23: #{tpu_custom_call.1} parent=11 // pred_region
          _
        $region24: #{tpu_custom_call.1} parent=11 // pred_fallthru
          _
        // Predicated region
        $region25: #{tpu_custom_call.1} parent=11 // pred_check
          %p271 = pneg %p132
        $region26: #{tpu_custom_call.1} parent=11 // pred_check_branch
          %273 = sbr.rel (%p271) target = $region28
        $region27: #{tpu_custom_call.1} parent=11 // pred_region
          _
        $region28: #{tpu_custom_call.1} parent=11 // pred_fallthru
          _
        // Predicated region
        $region29: #{tpu_custom_call.1} parent=11 // pred_check
          %p274 = pneg %p153
        $region30: #{tpu_custom_call.1} parent=11 // pred_check_branch
          %276 = sbr.rel (%p274) target = $region32
        $region31: #{tpu_custom_call.1} parent=11 // pred_region
          _
        $region32: #{tpu_custom_call.1} parent=11 // pred_fallthru
          _
        // Predicated region
        $region33: #{tpu_custom_call.1} parent=11 // pred_check
          %p277 = pneg %p174
        $region34: #{tpu_custom_call.1} parent=11 // pred_check_branch
          %279 = sbr.rel (%p277) target = $region36
        $region35: #{tpu_custom_call.1} parent=11 // pred_region
          _
        $region36: #{tpu_custom_call.1} parent=11 // pred_fallthru
          _
        // Predicated region
        $region37: #{tpu_custom_call.1} parent=11 // pred_check
          %p280 = pneg %p195
        $region38: #{tpu_custom_call.1} parent=11 // pred_check_branch
          %282 = sbr.rel (%p280) target = $region40
        $region39: #{tpu_custom_call.1} parent=11 // pred_region
          _
        $region40: #{tpu_custom_call.1} parent=11 // pred_fallthru
          _
      $region12: #{tpu_custom_call.1} parent=5 // pred_fallthru
        _
      %p283 = scmp.lt.s32.totalorder %s22, 2
      // Predicated region
      $region41: #{tpu_custom_call.1} parent=5 // pred_check
        %p284 = pneg %p283
      $region42: #{tpu_custom_call.1} parent=5 // pred_check_branch
        %286 = sbr.rel (%p284) target = $region44
      $region43: #{tpu_custom_call.1} parent=5 // pred_region
        // Predicated region
        $region45: #{tpu_custom_call.1} parent=43 // pred_check
          %p287 = pneg %p42
        $region46: #{tpu_custom_call.1} parent=43 // pred_check_branch
          %289 = sbr.rel (%p287) target = $region48
        $region47: #{tpu_custom_call.1} parent=43 // pred_region
          %p290 = scmp.lt.s32.totalorder %s22, 1
          %s291 = scalar_select %p290, %s22, 1
          %s292 = smul.addr %s291, 8
          %s293 = scalar_lea.vmem %s0, %s292
        $region48: #{tpu_custom_call.1} parent=43 // pred_fallthru
          _
      $region44: #{tpu_custom_call.1} parent=5 // pred_fallthru
        _
      %p294 = scmp.le.s32.totalorder 1, %s22
      %p295 = scmp.lt.s32.totalorder %s22, 3
      %p296 = pnand %p294, %p295
      %p297 = pneg %p296
      // Predicated region
      $region49: #{tpu_custom_call.1} parent=5 // pred_check
        _
      $region50: #{tpu_custom_call.1} parent=5 // pred_check_branch
        %299 = sbr.rel (%p296) target = $region52
      $region51: #{tpu_custom_call.1} parent=5 // pred_region
        %s300 = ssub.s32 %s22, 1
        %p301 = scmp.lt.s32.totalorder %s27, 1
        %s302 = scalar_select %p301, %s27, 1
        %s303 = smul.addr %s302, 8
        %s304 = scalar_lea.vmem %s0, %s303
        %p305 = pneg %p48
        %p306 = pneg %p45
        %p307 = pneg %p69
        %p308 = pneg %p66
        %p309 = pneg %p90
        %p310 = pneg %p87
        %p311 = pneg %p111
        %p312 = pneg %p108
        %p313 = pneg %p132
        %p314 = pneg %p129
        %p315 = pneg %p153
        %p316 = pneg %p150
        %p317 = pneg %p174
        %p318 = pneg %p171
        %p319 = pneg %p195
        %p320 = pneg %p192
        %p321 = pneg %p221
        %p322 = pneg %p218
        %s323 = sand.u32 %s208, 1
        %s324 = scalar_lea.sflag [#allocation3], %s323
        %s325 = sand.u32 %s208, 1
        %s326 = smul.addr %s325, 4
        %s327 = scalar_lea.vmem [#allocation2], %s326
        %p328 = pneg %p247
        %p329 = pneg %p244
        %s330 = sand.u32 %s234, 1
        %s331 = scalar_lea.sflag [#allocation5], %s330
        %s332 = sand.u32 %s234, 1
        %s333 = scalar_lea.vmem [#allocation4], %s332
        %p334 = scmp.lt.s32.totalorder %s27, 1
        %s335 = scalar_select %p334, %s27, 1
        %s336 = smul.addr %s335, 8
        %s337 = scalar_lea.vmem %s0, %s336
        %v338 = vld [vmem:[%s337] sm:$0xff]
        %v339 = vld [vmem:[%s1] sm:$0xff]
        %341 = vset.pattern.permute.xlu0 0
        %342 = vperm.xlu0 %341, %v339
        %v343 = vpop.permute.xlu0 %342
        %v345 = vmul.f32 %v343, %v338
        %v346 = vld [vmem:[%s2] sm:$0xff]
        %v347 = vld [vmem:[%s2 + $0x8] sm:$0xff]
        %v348 = vld [vmem:[%s2 + $0x10] sm:$0xff]
        %v349 = vld [vmem:[%s2 + $0x18] sm:$0xff]
        %v350 = vld [vmem:[%s3] sm:$0xff]
        %v351 = vld [vmem:[%s3 + $0x8] sm:$0xff]
        %v352 = vld [vmem:[%s3 + $0x10] sm:$0xff]
        %v353 = vld [vmem:[%s3 + $0x18] sm:$0xff]
        %355 = vset.pattern.permute.xlu0 0
        %356 = vperm.xlu0 %355, %v350
        %v357 = vpop.permute.xlu0 %356
        %360 = vset.pattern.permute.xlu0 0
        %361 = vperm.xlu0 %360, %v351
        %v362 = vpop.permute.xlu0 %361
        %365 = vset.pattern.permute.xlu0 0
        %366 = vperm.xlu0 %365, %v352
        %v367 = vpop.permute.xlu0 %366
        %370 = vset.pattern.permute.xlu0 0
        %371 = vperm.xlu0 %370, %v353
        %v372 = vpop.permute.xlu0 %371
        %vm374 = vcmask 64512
        %v376 = vsel %vm374, %v346, 0
        %v379 = vsel %vm374, %v347, 0
        %v382 = vsel %vm374, %v348, 0
        %v385 = vsel %vm374, %v349, 0
        %387 = vmatpush.msra.mxu0 0.0
        %388 = vmatpush.msra.mxu0 0.0
        %389 = vmatpush.msra.mxu0 0.0
        %390 = vmatpush.msra.mxu0 0.0
        %391 = vmatpush.msra.mxu0 0.0
        %392 = vmatpush.msra.mxu0 0.0
        %393 = vmatpush.msra.mxu0 0.0
        %394 = vmatpush.msra.mxu0 0.0
        %395 = vmatpush.msra.mxu0 0.0
        %396 = vmatpush.msra.mxu0 0.0
        %397 = vmatpush.msra.mxu0 0.0
        %398 = vmatpush.msra.mxu0 0.0
        %399 = vmatpush.msra.mxu0 0.0
        %400 = vmatpush.msra.mxu0 0.0
        %401 = vmatpush.msra.mxu0 0.0
        %402 = vmatpush.msra.mxu0 %v345
        %403 = vmatmul.f32.gmra.mxu0 %v376
        %v404 = vpop.f32.mrf.mxu0
        %v405 = vadd.f32 %v357, %v404
        %406 = vmatmul.f32.gmra.mxu0 %v379
        %v407 = vpop.f32.mrf.mxu0
        %v408 = vadd.f32 %v362, %v407
        %409 = vmatmul.f32.gmra.mxu0 %v382
        %v410 = vpop.f32.mrf.mxu0
        %v411 = vadd.f32 %v367, %v410
        %412 = vmatmul.f32.gmra.mxu0 %v385
        %v413 = vpop.f32.mrf.mxu0
        %v414 = vadd.f32 %v372, %v413
        %415 = vdwg.mxu0
        %vm416 = vcmp.gt.f32.partialorder %v405, 0.0
        %vm417 = vcmp.gt.f32.partialorder %v408, 0.0
        %vm418 = vcmp.gt.f32.partialorder %v411, 0.0
        %vm419 = vcmp.gt.f32.partialorder %v414, 0.0
        %v420 = vmul.f32 %v405, 0.01
        %v421 = vmul.f32 %v408, 0.01
        %v422 = vmul.f32 %v411, 0.01
        %v423 = vmul.f32 %v414, 0.01
        %v424 = vsel %vm416, %v405, %v420
        %v425 = vsel %vm417, %v408, %v421
        %v426 = vsel %vm418, %v411, %v422
        %v427 = vsel %vm419, %v414, %v423
        %v428 = vld [vmem:[%s4] sm:$0xff]
        %v429 = vld [vmem:[%s4 + $0x8] sm:$0xff]
        %v430 = vld [vmem:[%s4 + $0x10] sm:$0xff]
        %v431 = vld [vmem:[%s4 + $0x18] sm:$0xff]
        %v432 = vld [vmem:[%s5] sm:$0xff]
        %v433 = vld [vmem:[%s5 + $0x8] sm:$0xff]
        %v434 = vld [vmem:[%s5 + $0x10] sm:$0xff]
        %v435 = vld [vmem:[%s5 + $0x18] sm:$0xff]
        %437 = vset.pattern.permute.xlu0 0
        %438 = vperm.xlu0 %437, %v432
        %v439 = vpop.permute.xlu0 %438
        %442 = vset.pattern.permute.xlu0 0
        %443 = vperm.xlu0 %442, %v433
        %v444 = vpop.permute.xlu0 %443
        %447 = vset.pattern.permute.xlu0 0
        %448 = vperm.xlu0 %447, %v434
        %v449 = vpop.permute.xlu0 %448
        %452 = vset.pattern.permute.xlu0 0
        %453 = vperm.xlu0 %452, %v435
        %v454 = vpop.permute.xlu0 %453
        %vm456 = vcmask 261120
        %v458 = vsel %vm456, %v428, 0
        %v461 = vsel %vm456, %v429, 0
        %v464 = vsel %vm456, %v430, 0
        %v467 = vsel %vm456, %v431, 0
        %469 = vmatpush.msra.mxu0 0.0
        %470 = vmatpush.msra.mxu0 0.0
        %471 = vmatpush.msra.mxu0 0.0
        %472 = vmatpush.msra.mxu0 0.0
        %473 = vmatpush.msra.mxu0 0.0
        %474 = vmatpush.msra.mxu0 0.0
        %475 = vmatpush.msra.mxu0 0.0
        %476 = vmatpush.msra.mxu0 0.0
        %477 = vmatpush.msra.mxu0 0.0
        %478 = vmatpush.msra.mxu0 0.0
        %479 = vmatpush.msra.mxu0 0.0
        %480 = vmatpush.msra.mxu0 0.0
        %481 = vmatpush.msra.mxu0 %v427
        %482 = vmatpush.msra.mxu0 %v426
        %483 = vmatpush.msra.mxu0 %v425
        %484 = vmatpush.msra.mxu0 %v424
        %485 = vmatmul.f32.gmra.mxu0 %v458
        %v486 = vpop.f32.mrf.mxu0
        %v487 = vadd.f32 %v439, %v486
        %488 = vmatmul.f32.gmra.mxu0 %v461
        %v489 = vpop.f32.mrf.mxu0
        %v490 = vadd.f32 %v444, %v489
        %491 = vmatmul.f32.gmra.mxu0 %v464
        %v492 = vpop.f32.mrf.mxu0
        %v493 = vadd.f32 %v449, %v492
        %494 = vmatmul.f32.gmra.mxu0 %v467
        %v495 = vpop.f32.mrf.mxu0
        %v496 = vadd.f32 %v454, %v495
        %497 = vdwg.mxu0
        %vm498 = vcmp.gt.f32.partialorder %v487, 0.0
        %vm499 = vcmp.gt.f32.partialorder %v490, 0.0
        %vm500 = vcmp.gt.f32.partialorder %v493, 0.0
        %vm501 = vcmp.gt.f32.partialorder %v496, 0.0
        %v502 = vmul.f32 %v487, 0.01
        %v503 = vmul.f32 %v490, 0.01
        %v504 = vmul.f32 %v493, 0.01
        %v505 = vmul.f32 %v496, 0.01
        %v506 = vsel %vm498, %v487, %v502
        %v507 = vsel %vm499, %v490, %v503
        %v508 = vsel %vm500, %v493, %v504
        %v509 = vsel %vm501, %v496, %v505
        %v510 = vld [vmem:[%s6] sm:$0xff]
        %v511 = vld [vmem:[%s7] sm:$0xff]
        %513 = vset.pattern.permute.xlu0 0
        %514 = vperm.xlu0 %513, %v511
        %v515 = vpop.permute.xlu0 %514
        %v518 = vsel %vm456, %v510, 0
        %520 = vmatpush.msra.mxu0 0.0
        %521 = vmatpush.msra.mxu0 0.0
        %522 = vmatpush.msra.mxu0 0.0
        %523 = vmatpush.msra.mxu0 0.0
        %524 = vmatpush.msra.mxu0 0.0
        %525 = vmatpush.msra.mxu0 0.0
        %526 = vmatpush.msra.mxu0 0.0
        %527 = vmatpush.msra.mxu0 0.0
        %528 = vmatpush.msra.mxu0 0.0
        %529 = vmatpush.msra.mxu0 0.0
        %530 = vmatpush.msra.mxu0 0.0
        %531 = vmatpush.msra.mxu0 0.0
        %532 = vmatpush.msra.mxu0 %v509
        %533 = vmatpush.msra.mxu0 %v508
        %534 = vmatpush.msra.mxu0 %v507
        %535 = vmatpush.msra.mxu0 %v506
        %536 = vmatmul.f32.gmra.mxu0 %v518
        %v537 = vpop.f32.mrf.mxu0
        %v538 = vadd.f32 %v515, %v537
        %539 = vdwg.mxu0
        %v540 = vtanh.pop %v538
        %v541 = vsub.f32 1.0, %v339
        %v542 = vmul.f32 %v540, 1.442695
        %v543 = vpow.pop %v542
        %v544 = vmul.f32 %v338, %v543
        %v546 = vrot.slane %v538, 4
        %v548 = vadd.f32 %v544, %v546
        %550 = vset.pattern.permute.xlu0 0
        %551 = vperm.xlu0 %550, %v541
        %v552 = vpop.permute.xlu0 %551
        %v554 = vmul.f32 %v552, %v548
        %v555 = vadd.f32 %v345, %v554
        %v556 = vmul.f32 %v540, %v552
        %vm557 = vcmask 1043456
        %v558 = vsel %vm557, %v556, 0.0
        %v559 = vrot.slane %v558, 4
        %v560 = vadd.f32 %v558, %v559
        %v561 = vrot.slane %v560, 2
        %v562 = vadd.f32 %v560, %v561
        %v563 = vrot.slane %v562, 1
        %v564 = vadd.f32 %v562, %v563
        %565 = vst [vmem:[%s327] sm:$0xf] %v555
        %566 = vst [vmem:[%s333] sm:$0x1] %v564
        %s567 = sand.u32 %s208, 1
        %s568 = scalar_lea.sflag [#allocation3], %s567
        %s569 = sand.u32 %s208, 1
        %s570 = smul.addr %s569, 4
        %s571 = scalar_lea.vmem [#allocation2], %s570
        %s572 = sand.u32 %s234, 1
        %s573 = scalar_lea.sflag [#allocation5], %s572
        %s574 = sand.u32 %s234, 1
        %s575 = scalar_lea.vmem [#allocation4], %s574
        // Predicated region
        $region53: #{tpu_custom_call.1} parent=51 // pred_check
          %p576 = pneg %p218
        $region54: #{tpu_custom_call.1} parent=51 // pred_check_branch
          %578 = sbr.rel (%p576) target = $region56
        $region55: #{tpu_custom_call.1} parent=51 // pred_region
          %580 = vsyncadd %s568, 0
          %s581 = smul.addr %s27, 4
          %s582 = scalar_lea.hbm %s8, %s581
          %s584 = sshll.u32 %s571, 4
          %s585 = int_to_ptr.vmem [resolvable:$true] %s584
          %s586 = sshll.u32 %s582, 4
          %s587 = int_to_ptr.hbm [resolvable:$true] %s586
          %589 = dma.vmem_to_hbm [thread:$0]  %s585, 64, %s587, %s568
        $region56: #{tpu_custom_call.1} parent=51 // pred_fallthru
          _
        // Predicated region
        $region57: #{tpu_custom_call.1} parent=51 // pred_check
          %p590 = pneg %p244
        $region58: #{tpu_custom_call.1} parent=51 // pred_check_branch
          %592 = sbr.rel (%p590) target = $region60
        $region59: #{tpu_custom_call.1} parent=51 // pred_region
          %594 = vsyncadd %s573, 0
          %s595 = scalar_lea.hbm %s9, %s27
          %s597 = sshll.u32 %s575, 4
          %s598 = int_to_ptr.vmem [resolvable:$true] %s597
          %s599 = sshll.u32 %s595, 4
          %s600 = int_to_ptr.hbm [resolvable:$true] %s599
          %602 = dma.vmem_to_hbm [thread:$0]  %s598, 16, %s600, %s573
        $region60: #{tpu_custom_call.1} parent=51 // pred_fallthru
          _
      $region52: #{tpu_custom_call.1} parent=5 // pred_fallthru
        _
      %p603 = scmp.le.s32.totalorder 2, %s22
      // Predicated region
      $region61: #{tpu_custom_call.1} parent=5 // pred_check
        %p604 = pneg %p603
      $region62: #{tpu_custom_call.1} parent=5 // pred_check_branch
        %606 = sbr.rel (%p604) target = $region64
      $region63: #{tpu_custom_call.1} parent=5 // pred_region
        %s607 = ssub.s32 %s22, 2
        // Predicated region
        $region65: #{tpu_custom_call.1} parent=63 // pred_check
          %p608 = pneg %p224
        $region66: #{tpu_custom_call.1} parent=63 // pred_check_branch
          %610 = sbr.rel (%p608) target = $region68
        $region67: #{tpu_custom_call.1} parent=63 // pred_region
          %s611 = sand.u32 %s209, 1
          %s612 = scalar_lea.sflag [#allocation3], %s611
          %s613 = sand.u32 %s209, 1
          %s614 = smul.addr %s613, 4
          %s615 = scalar_lea.vmem [#allocation2], %s614
          %617 = dma.done %s612, 64
        $region68: #{tpu_custom_call.1} parent=63 // pred_fallthru
          _
        // Predicated region
        $region69: #{tpu_custom_call.1} parent=63 // pred_check
          %p618 = pneg %p250
        $region70: #{tpu_custom_call.1} parent=63 // pred_check_branch
          %620 = sbr.rel (%p618) target = $region72
        $region71: #{tpu_custom_call.1} parent=63 // pred_region
          %s621 = sand.u32 %s235, 1
          %s622 = scalar_lea.sflag [#allocation5], %s621
          %s623 = sand.u32 %s235, 1
          %s624 = scalar_lea.vmem [#allocation4], %s623
          %626 = dma.done %s622, 16
        $region72: #{tpu_custom_call.1} parent=63 // pred_fallthru
          _
      $region64: #{tpu_custom_call.1} parent=5 // pred_fallthru
        _
    $region6: #{tpu_custom_call.1} parent=1 // loop_footer
      %s26 = sadd.s32 1, %s22
    $region7: #{tpu_custom_call.1} parent=1 // loop_footer_branch
      %21 = sbr.rel target = $region3
    $region8: #{tpu_custom_call.1} parent=1 // loop_exit
      _
    %627 = vsyncpa [#allocation3], 1
    %s628 = scalar_lea.sflag [#allocation3], 1
    %629 = vsyncpa %s628, 1
    %630 = vsyncpa [#allocation5], 1
    %s631 = scalar_lea.sflag [#allocation5], 1
    %632 = vsyncpa %s631, 1

</llo_original>
